<compile_context>
chip_gen: v7x
topology: tpu7x:2x2x1
jax: 0.10.0
libtpu: 0.0.40
codegen_flags: <defaults>
</compile_context>

<pallas_src>
import functools

import jax
import jax.numpy as jnp
from jax import lax
from jax.experimental import pallas as pl
from jax.experimental.pallas import tpu as pltpu


# ----------------------------------------------------------------------------
# Tiling helper: largest tile t <= cap with t % quantum == 0 and dim % t == 0,
# otherwise fall back to the full dimension (allowed by the (8,128) block rule).
# prefer_split caps the tile at dim/2 so a "parallel" axis gets >= 2 blocks
# (v7x has 2 TensorCores per chip).
# ----------------------------------------------------------------------------
def _pick_tile(dim, target, quantum, prefer_split=False):
    cap = target
    if prefer_split:
        half = ((dim // 2) // quantum) * quantum
        if half >= quantum:
            cap = min(cap, half)
    if dim <= cap:
        return dim
    t = (cap // quantum) * quantum
    while t >= quantum:
        if dim % t == 0:
            return t
        t -= quantum
    # TODO(synk): ragged dims (no multiple-of-quantum divisor) fall back to a single
    # full-dim block; extremely large ragged dims would need masked/padded tiles.
    return dim


# ----------------------------------------------------------------------------
# Fused single-pass kernel (primary path): one sample's (C, L) slab in VMEM.
#   - per-channel mean: VPU adds over 128-lane chunks, one cross-lane reduce at the end
#   - k=3 zero-padded channel conv as a banded (C,C) matrix (iota-built) x (C,1) matvec
#     on the MXU (avoids sublane shifts entirely)
#   - y = x * (1 + sigmoid(conv))   (residual fused into the gate)
# ----------------------------------------------------------------------------
def _fused_eca_kernel(inv_l, w_ref, x_ref, o_ref):
    C, L = x_ref.shape

    # ---- per-channel spatial mean ------------------------------------------
    if L % 128 == 0 and L > 128:
        nk = L // 128

        def body(k, a):
            off = pl.multiple_of(k * 128, 128)
            return a + x_ref[:, pl.ds(off, 128)].astype(jnp.float32)

        part = lax.fori_loop(0, nk, body, jnp.zeros((C, 128), jnp.float32),
                             unroll=min(8, nk))
        means = jnp.sum(part, axis=1, keepdims=True) * inv_l          # (C, 1)
    else:
        means = jnp.sum(x_ref[...].astype(jnp.float32), axis=1,
                        keepdims=True) * inv_l                        # (C, 1)

    # ---- k=3 channel conv (padding=1, no bias) + sigmoid ---------------------
    row = lax.broadcasted_iota(jnp.int32, (C, C), 0)                  # dest channel c
    col = lax.broadcasted_iota(jnp.int32, (C, C), 1)                  # src  channel j
    band = (jnp.where(col == row - 1, w_ref[0], 0.0)
            + jnp.where(col == row, w_ref[1], 0.0)
            + jnp.where(col == row + 1, w_ref[2], 0.0)).astype(jnp.float32)
    conv = jnp.dot(band, means, preferred_element_type=jnp.float32)   # (C, 1)
    gate = 1.0 + jax.nn.sigmoid(conv)                                 # y = x*(1+g) = ECA(x)+x

    o_ref[...] = (x_ref[...] * gate).astype(o_ref.dtype)


# ----------------------------------------------------------------------------
# Fallback pass 1: global average pool over H*W.
#   x viewed as (M, L), M = B*C rows, L = H*W lanes.
#   grid = (row tiles [parallel], lane tiles [arbitrary reduction, last]).
#   acc is (tr, 128): steady-state work is lane-aligned VPU adds; the single
#   cross-lane (XLU) reduce happens only in the finalize.
# ----------------------------------------------------------------------------
def _pool_kernel(inv_l, x_ref, o_ref, acc_ref):
    @pl.when(pl.program_id(1) == 0)
    def _():
        acc_ref[...] = jnp.zeros_like(acc_ref)

    tl = x_ref.shape[1]
    if tl % 128 == 0:
        nk = tl // 128

        def body(k, a):
            off = pl.multiple_of(k * 128, 128)
            return a + x_ref[:, pl.ds(off, 128)].astype(jnp.float32)

        acc_ref[...] += lax.fori_loop(0, nk, body, jnp.zeros_like(acc_ref),
                                      unroll=min(8, nk))
    else:
        acc_ref[:, 0:1] += jnp.sum(x_ref[...].astype(jnp.float32), axis=1,
                                   keepdims=True)

    @pl.when(pl.program_id(1) == pl.num_programs(1) - 1)
    def _():
        o_ref[...] = jnp.sum(acc_ref[...], axis=1, keepdims=True) * inv_l


# ----------------------------------------------------------------------------
# Fallback pass 2: y = x * gate, where gate already contains the residual (1 + sigmoid).
# ----------------------------------------------------------------------------
def _apply_kernel(x_ref, g_ref, o_ref):
    o_ref[...] = (x_ref[...] * g_ref[...]).astype(o_ref.dtype)


# ----------------------------------------------------------------------------
# ResAttenBlock forward (attention_mode='ECA')
# ----------------------------------------------------------------------------
def res_atten_block_forward(x, eca_w, *, row_tile=256, lane_tile=8192,
                            fused_slab_limit_bytes=8 * 1024 * 1024,
                            vmem_limit_bytes=48 * 1024 * 1024,
                            force_two_pass=False, donate_input=False):
    """x: (B, C, H, W) float32 (NCHW).  eca_w: Conv1d(1,1,3,pad=1,bias=False) weight,
    shape (3,) or (1,1,3) (PyTorch layout); it is flattened here."""
    B, C, H, W = x.shape
    M, L = B * C, H * W
    eca_w = jnp.asarray(eca_w, jnp.float32).reshape(-1)
    assert eca_w.shape == (3,), "ECA Conv1d kernel_size must be 3"
    inv_l = 1.0 / float(L)
    itemsize = x.dtype.itemsize

    slab_bytes = C * L * itemsize
    use_fused = (not force_two_pass) and (slab_bytes <= fused_slab_limit_bytes)

    if use_fused:
        # ---- single pass: read x once, write y once (2N HBM traffic) --------
        x3 = x.reshape(B, C, L)                                 # free view
        y = pl.pallas_call(
            functools.partial(_fused_eca_kernel, inv_l),
            out_shape=jax.ShapeDtypeStruct((B, C, L), x.dtype),
            grid=(B,),
            in_specs=[
                pl.BlockSpec(memory_space=pltpu.MemorySpace.SMEM),      # (3,) conv weights
                pl.BlockSpec((None, C, L), lambda b: (b, 0, 0)),
            ],
            out_specs=pl.BlockSpec((None, C, L), lambda b: (b, 0, 0)),
            compiler_params=pltpu.CompilerParams(
                dimension_semantics=("parallel",),
                vmem_limit_bytes=vmem_limit_bytes),
            cost_estimate=pl.CostEstimate(
                flops=3 * B * C * L, transcendentals=B * C,
                bytes_accessed=2 * B * C * L * itemsize),
            input_output_aliases=({1: 0} if donate_input else {}),
        )(eca_w, x3)
        return y.reshape(B, C, H, W)

    # ---- fallback: two bulk passes (x read twice, written once) -------------
    xf = x.reshape(M, L)                                        # free view: rows=(b,c)
    tr = _pick_tile(M, row_tile, 8, prefer_split=True)
    tl = _pick_tile(L, lane_tile, 128)
    grid = (M // tr, L // tl)

    pooled = pl.pallas_call(
        functools.partial(_pool_kernel, inv_l),
        out_shape=jax.ShapeDtypeStruct((M, 1), jnp.float32),
        grid=grid,
        in_specs=[pl.BlockSpec((tr, tl), lambda i, j: (i, j))],
        out_specs=pl.BlockSpec((tr, 1), lambda i, j: (i, 0)),
        scratch_shapes=[pltpu.VMEM((tr, 128), jnp.float32)],
        compiler_params=pltpu.CompilerParams(
            dimension_semantics=("parallel", "arbitrary"),
            vmem_limit_bytes=vmem_limit_bytes),
        cost_estimate=pl.CostEstimate(
            flops=M * L, transcendentals=0,
            bytes_accessed=M * L * itemsize + M * 4),
    )(xf)

    # Tiny O(B*C) channel-gate glue (fuses into one small XLA op); the residual
    # add is folded into the gate: gate = 1 + sigmoid(conv).
    pp = jnp.pad(pooled.reshape(B, C), ((0, 0), (1, 1)))
    conv = (eca_w[0] * pp[:, 0:C]
            + eca_w[1] * pp[:, 1:C + 1]
            + eca_w[2] * pp[:, 2:C + 2])
    gate = (1.0 + jax.nn.sigmoid(conv)).reshape(M, 1).astype(jnp.float32)

    y = pl.pallas_call(
        _apply_kernel,
        out_shape=jax.ShapeDtypeStruct((M, L), x.dtype),
        grid=grid,
        in_specs=[
            pl.BlockSpec((tr, tl), lambda i, j: (i, j)),
            pl.BlockSpec((tr, 1), lambda i, j: (i, 0)),
        ],
        out_specs=pl.BlockSpec((tr, tl), lambda i, j: (i, j)),
        compiler_params=pltpu.CompilerParams(
            dimension_semantics=("parallel", "parallel"),
            vmem_limit_bytes=vmem_limit_bytes),
        cost_estimate=pl.CostEstimate(
            flops=M * L, transcendentals=0,
            bytes_accessed=2 * M * L * itemsize + M * 4),
        input_output_aliases=({0: 0} if donate_input else {}),
    )(xf, gate)
    return y.reshape(B, C, H, W)


if __name__ == "__main__":
    key = jax.random.PRNGKey(0)
    k_x, k_w = jax.random.split(key)

    B, C, H, W = 2, 4, 16, 16
    x = jax.random.normal(k_x, (B, C, H, W), jnp.float32)            # NCHW input

    # Conv1d(1, 1, kernel_size=3, padding=1, bias=False) weight, PyTorch layout (1,1,3).
    bound = 1.0 / (3.0 ** 0.5)
    eca_w = jax.random.uniform(k_w, (1, 1, 3), jnp.float32, -bound, bound)

    # Pure-JAX reference of ResAttenBlock(ECA): y = x * sigmoid(conv1d_k3(gap(x))) + x
    w = eca_w.reshape(-1)
    pool_ref = jnp.mean(x, axis=(2, 3))                              # (B, C)
    pp = jnp.pad(pool_ref, ((0, 0), (1, 1)))
    conv_ref = w[0] * pp[:, :C] + w[1] * pp[:, 1:C + 1] + w[2] * pp[:, 2:C + 2]
    ref = x * jax.nn.sigmoid(conv_ref)[:, :, None, None] + x

    # Primary fused single-pass path.
    y_fused = res_atten_block_forward(x, eca_w)
    jax.block_until_ready(y_fused)
    assert y_fused.shape == (B, C, H, W)

    # Two-pass fallback path (exercised here to keep it verified too).
    y_twopass = res_atten_block_forward(x, eca_w, force_two_pass=True)
    jax.block_until_ready(y_twopass)
    assert y_twopass.shape == (B, C, H, W)

    err1 = float(jnp.max(jnp.abs(y_fused - ref)))
    err2 = float(jnp.max(jnp.abs(y_twopass - ref)))
    assert err1 < 1e-4, f"fused path max abs error {err1}"
    assert err2 < 1e-4, f"two-pass path max abs error {err2}"
    print("KERNEL_OK")
</pallas_src>

<mosaic_0001>
module attributes {stable_mosaic.version = 11 : i64} {
  func.func @_fused_eca_kernel(%arg0: i32, %arg1: memref<3xf32, #tpu.memory_space<smem>>, %arg2: memref<1x4x256xf32, #tpu.memory_space<vmem>>, %arg3: memref<1x4x256xf32, #tpu.memory_space<vmem>>) attributes {dimension_semantics = [#tpu.dimension_semantics<parallel>], iteration_bounds = array<i64: 2>, scalar_prefetch = 0 : i64, scratch_operands = 0 : i64, tpu.core_type = #tpu.core_type<tc>, window_params = [{transform_indices = @transform_0, window_bounds = array<i64: 3>}, {transform_indices = @transform_1, window_bounds = array<i64: 1, 4, 256>}, {transform_indices = @transform_2, window_bounds = array<i64: 1, 4, 256>}]} {
    %cst = arith.constant 0.000000e+00 : f32
    %0 = vector.broadcast %cst : f32 to vector<4x128xf32>
    %c0_i32 = arith.constant 0 : i32
    %c128_i32 = arith.constant 128 : i32
    %1 = arith.muli %c0_i32, %c128_i32 : i32
    %2 = tpu.assume_multiple %1, 128 : i32
    %c0 = arith.constant 0 : index
    %c0_0 = arith.constant 0 : index
    %3 = arith.index_cast %2 : i32 to index
    %4 = vector.load %arg2[%c0, %c0_0, %3] : memref<1x4x256xf32, #tpu.memory_space<vmem>>, vector<1x4x128xf32>
    %5 = vector.shape_cast %4 : vector<1x4x128xf32> to vector<4x128xf32>
    %6 = arith.addf %0, %5 : vector<4x128xf32>
    %c1_i32 = arith.constant 1 : i32
    %c128_i32_1 = arith.constant 128 : i32
    %7 = arith.muli %c1_i32, %c128_i32_1 : i32
    %8 = tpu.assume_multiple %7, 128 : i32
    %c0_2 = arith.constant 0 : index
    %c0_3 = arith.constant 0 : index
    %9 = arith.index_cast %8 : i32 to index
    %10 = vector.load %arg2[%c0_2, %c0_3, %9] : memref<1x4x256xf32, #tpu.memory_space<vmem>>, vector<1x4x128xf32>
    %11 = vector.shape_cast %10 : vector<1x4x128xf32> to vector<4x128xf32>
    %12 = arith.addf %6, %11 : vector<4x128xf32>
    %c2_i32 = arith.constant 2 : i32
    %cst_4 = arith.constant dense<0.000000e+00> : vector<4xf32>
    %13 = vector.multi_reduction <add>, %12, %cst_4 [1] : vector<4x128xf32> to vector<4xf32>
    %14 = vector.shape_cast %13 : vector<4xf32> to vector<4x1xf32>
    %cst_5 = arith.constant 3.906250e-03 : f32
    %15 = vector.broadcast %cst_5 : f32 to vector<4x1xf32>
    %16 = arith.mulf %14, %15 : vector<4x1xf32>
    %17 = tpu.iota {dimensions = array<i32: 0>} : vector<4x4xi32>
    %18 = tpu.iota {dimensions = array<i32: 1>} : vector<4x4xi32>
    %c1_i32_6 = arith.constant 1 : i32
    %19 = vector.broadcast %c1_i32_6 : i32 to vector<4x4xi32>
    %20 = arith.subi %17, %19 : vector<4x4xi32>
    %21 = arith.cmpi eq, %18, %20 : vector<4x4xi32>
    %c0_7 = arith.constant 0 : index
    %22 = memref.load %arg1[%c0_7] : memref<3xf32, #tpu.memory_space<smem>>
    %cst_8 = arith.constant 0.000000e+00 : f32
    %23 = vector.broadcast %22 : f32 to vector<4x4xf32>
    %24 = vector.broadcast %cst_8 : f32 to vector<4x4xf32>
    %25 = arith.select %21, %23, %24 : vector<4x4xi1>, vector<4x4xf32>
    %26 = arith.cmpi eq, %18, %17 : vector<4x4xi32>
    %c1 = arith.constant 1 : index
    %27 = memref.load %arg1[%c1] : memref<3xf32, #tpu.memory_space<smem>>
    %cst_9 = arith.constant 0.000000e+00 : f32
    %28 = vector.broadcast %27 : f32 to vector<4x4xf32>
    %29 = vector.broadcast %cst_9 : f32 to vector<4x4xf32>
    %30 = arith.select %26, %28, %29 : vector<4x4xi1>, vector<4x4xf32>
    %31 = arith.addf %25, %30 : vector<4x4xf32>
    %c1_i32_10 = arith.constant 1 : i32
    %32 = vector.broadcast %c1_i32_10 : i32 to vector<4x4xi32>
    %33 = arith.addi %17, %32 : vector<4x4xi32>
    %34 = arith.cmpi eq, %18, %33 : vector<4x4xi32>
    %c2 = arith.constant 2 : index
    %35 = memref.load %arg1[%c2] : memref<3xf32, #tpu.memory_space<smem>>
    %cst_11 = arith.constant 0.000000e+00 : f32
    %36 = vector.broadcast %35 : f32 to vector<4x4xf32>
    %37 = vector.broadcast %cst_11 : f32 to vector<4x4xf32>
    %38 = arith.select %34, %36, %37 : vector<4x4xi1>, vector<4x4xf32>
    %39 = arith.addf %31, %38 : vector<4x4xf32>
    %cst_12 = arith.constant dense<0.000000e+00> : vector<4x1xf32>
    %40 = tpu.matmul %39, %16, %cst_12 {dimension_numbers = #tpu.dot_dimension_numbers<[1], [0], [0], [1], [0, 0, 1, 1], [], []>} : vector<4x4xf32>, vector<4x1xf32>, vector<4x1xf32> -> vector<4x1xf32>
    %41 = arith.negf %40 : vector<4x1xf32>
    %42 = math.exp %41 : vector<4x1xf32>
    %cst_13 = arith.constant 1.000000e+00 : f32
    %43 = vector.broadcast %cst_13 : f32 to vector<4x1xf32>
    %44 = arith.addf %43, %42 : vector<4x1xf32>
    %45 = arith.divf %43, %44 : vector<4x1xf32>
    %cst_14 = arith.constant 1.000000e+00 : f32
    %46 = vector.broadcast %cst_14 : f32 to vector<4x1xf32>
    %47 = arith.addf %46, %45 : vector<4x1xf32>
    %c0_15 = arith.constant 0 : index
    %c0_16 = arith.constant 0 : index
    %c0_17 = arith.constant 0 : index
    %48 = vector.load %arg2[%c0_15, %c0_16, %c0_17] : memref<1x4x256xf32, #tpu.memory_space<vmem>>, vector<1x4x256xf32>
    %49 = vector.shape_cast %48 : vector<1x4x256xf32> to vector<4x256xf32>
    %50 = vector.broadcast %47 : vector<4x1xf32> to vector<4x256xf32>
    %51 = arith.mulf %49, %50 : vector<4x256xf32>
    %c0_18 = arith.constant 0 : index
    %c0_19 = arith.constant 0 : index
    %c0_20 = arith.constant 0 : index
    %52 = vector.load %arg3[%c0_18, %c0_19, %c0_20] : memref<1x4x256xf32, #tpu.memory_space<vmem>>, vector<1x4x256xf32>
    %53 = vector.shape_cast %52 : vector<1x4x256xf32> to vector<4x256xf32>
    %54 = vector.shape_cast %51 : vector<4x256xf32> to vector<1x4x256xf32>
    tpu.vector_store %arg3[%c0_18, %c0_19, %c0_20], %54 {strides = array<i32>} : memref<1x4x256xf32, #tpu.memory_space<vmem>>, vector<1x4x256xf32>,
    return
  }
  func.func @transform_0(%arg0: i32) -> i32 {
    %c0_i32 = arith.constant 0 : i32
    %c0_i32_0 = arith.constant 0 : i32
    return %c0_i32 : i32
  }
  func.func @transform_1(%arg0: i32) -> (i32, i32, i32) {
    %c0_i32 = arith.constant 0 : i32
    %c0_i32_0 = arith.constant 0 : i32
    %c0_i32_1 = arith.constant 0 : i32
    return %arg0, %c0_i32, %c0_i32_0 : i32, i32, i32
  }
  func.func @transform_2(%arg0: i32) -> (i32, i32, i32) {
    %c0_i32 = arith.constant 0 : i32
    %c0_i32_0 = arith.constant 0 : i32
    %c0_i32_1 = arith.constant 0 : i32
    return %arg0, %c0_i32, %c0_i32_0 : i32, i32, i32
  }
}

</mosaic_0001>

<llo_original>
// kernel: tpu_custom_call.1
$region0: #{tpu_custom_call.1}
  #allocation0 [shape = 'u32[]', space=smem, size = 0x4, offset = 0x4, fixed_abs, tag = 'smem constant byte address 0x4 - core index']
  #allocation1 [shape = 'u32[144,128]{1,0:T(1,128)}', space=vmem, size = 0x12000, scoped, tag = 'internal scratch']
  %s0 = inlined_call_operand.hbm [shape: f32[3], index: 0, kind: input, shape index: {}]
  %s1 = inlined_call_operand.hbm [shape: f32[2,4,256], index: 1, kind: input, shape index: {}]
  %s2 = inlined_call_operand.hbm [shape: f32[2,4,256], index: 2, kind: output, shape index: {}]
  %s3 = sld [smem:[#allocation0]]
  $region49: #{tpu_custom_call.1} parent=0
    _
  %s5 = ssub.s32 1, %s3
  %s6 = scalar_select 0, %s5, %s3
  $region1: #{tpu_custom_call.1} parent=0
    #allocation2 [shape = 'u8[512]{0}', space=smem, size = 0x200, scoped, tag = 'input window, operand 0, single buffered']
    #allocation3 [shape = 's32[2]{0}', space=sflag, size = 0x8, scoped, tag = 'scoped memory for tpu_custom_call.1']
    #allocation4 [shape = 's32[2]{0}', space=sflag, size = 0x8, scoped, tag = 'scoped memory for tpu_custom_call.1']
    #allocation5 [shape = 's32[2]{0}', space=sflag, size = 0x8, scoped, tag = 'scoped memory for tpu_custom_call.1']
    #allocation6 [shape = 'u8[8192]{0}', space=vmem, size = 0x2000, scoped, tag = 'input window, operand 1']
    #allocation7 [shape = 'u8[8192]{0}', space=vmem, size = 0x2000, scoped, tag = 'output window, operand 0']
    %7 = vsyncpa [#allocation5], 0
    %8 = vsyncpa [#allocation3], 0
    %s9 = scalar_lea.sflag [#allocation3], 1
    %10 = vsyncpa %s9, 0
    %11 = vsyncpa [#allocation4], 0
    %s12 = scalar_lea.sflag [#allocation4], 1
    %13 = vsyncpa %s12, 0
    loop: start=0, step=1, limit=4
    $region2: #{tpu_custom_call.1} parent=1 // loop_pre_header
      _
    $region3: #{tpu_custom_call.1} parent=1 // loop_header
      %s15 = sphi 0, %s19
      %p16 = scmp.ge.s32.totalorder %s15, 4
      %s23 = sphi 0, %s23
      %s25 = sphi 0, %s23
      %s26 = sphi 0, %s25
      %s40 = sphi 0, %s26
      %s46 = sphi 0, %s48
      %s49 = sphi 0, %s46
      %s50 = sphi 0, %s49
      %s66 = sphi 0, %s50
      %s72 = sphi 0, %s74
      %s75 = sphi 0, %s72
      %s76 = sphi 0, %s75
      %s92 = sphi 0, %s76
    $region4: #{tpu_custom_call.1} parent=1 // loop_header_branch
      %18 = sbr.rel (%p16) target = $region8
    $region5: #{tpu_custom_call.1} parent=1 // loop_body
      %s20 = ssub.s32 %s15, 1
      %s21 = ssub.s32 %s15, 2
      %s22 = sadd.s32 %s15, 1
      %s24 = sadd.s32 %s23, 1
      %p27 = scmp.eq.s32.totalorder %s15, 1
      %p28 = scmp.ne.s32.totalorder %s23, %s25
      %p29 = scmp.eq.s32.totalorder %s15, 0
      %p30 = por %p28, %p29
      %p31 = scmp.ne.s32.totalorder %s23, %s25
      %p32 = scmp.eq.s32.totalorder %s20, 1
      %p33 = por %p31, %p32
      %p34 = scmp.ne.s32.totalorder %s25, %s26
      %p35 = scmp.eq.s32.totalorder %s20, 0
      %p36 = por %p34, %p35
      %p37 = scmp.ne.s32.totalorder %s25, %s26
      %p38 = scmp.eq.s32.totalorder %s21, 1
      %p39 = por %p37, %p38
      %p41 = scmp.ne.s32.totalorder %s26, %s40
      %p42 = scmp.eq.s32.totalorder %s21, 0
      %p43 = por %p41, %p42
      %s44 = ssub.s32 %s15, %s22
      %p45 = scmp.eq.s32.totalorder %s44, 0
      %s47 = sadd.s32 %s46, 1
      %s48 = scalar_select %p45, %s46, %s47
      %p51 = pneg %p45
      %p52 = scmp.eq.s32.totalorder %s15, 1
      %p53 = por %p51, %p52
      %p54 = scmp.ne.s32.totalorder %s46, %s49
      %p55 = scmp.eq.s32.totalorder %s15, 0
      %p56 = por %p54, %p55
      %p57 = scmp.ne.s32.totalorder %s46, %s49
      %p58 = scmp.eq.s32.totalorder %s20, 1
      %p59 = por %p57, %p58
      %p60 = scmp.ne.s32.totalorder %s49, %s50
      %p61 = scmp.eq.s32.totalorder %s20, 0
      %p62 = por %p60, %p61
      %p63 = scmp.ne.s32.totalorder %s49, %s50
      %p64 = scmp.eq.s32.totalorder %s21, 1
      %p65 = por %p63, %p64
      %p67 = scmp.ne.s32.totalorder %s50, %s66
      %p68 = scmp.eq.s32.totalorder %s21, 0
      %p69 = por %p67, %p68
      %s70 = ssub.s32 %s15, %s22
      %p71 = scmp.eq.s32.totalorder %s70, 0
      %s73 = sadd.s32 %s72, 1
      %s74 = scalar_select %p71, %s72, %s73
      %p77 = pneg %p71
      %p78 = scmp.eq.s32.totalorder %s15, 1
      %p79 = por %p77, %p78
      %p80 = scmp.ne.s32.totalorder %s72, %s75
      %p81 = scmp.eq.s32.totalorder %s15, 0
      %p82 = por %p80, %p81
      %p83 = scmp.ne.s32.totalorder %s72, %s75
      %p84 = scmp.eq.s32.totalorder %s20, 1
      %p85 = por %p83, %p84
      %p86 = scmp.ne.s32.totalorder %s75, %s76
      %p87 = scmp.eq.s32.totalorder %s20, 0
      %p88 = por %p86, %p87
      %p89 = scmp.ne.s32.totalorder %s75, %s76
      %p90 = scmp.eq.s32.totalorder %s21, 1
      %p91 = por %p89, %p90
      %p93 = scmp.ne.s32.totalorder %s76, %s92
      %p94 = scmp.eq.s32.totalorder %s21, 0
      %p95 = por %p93, %p94
      %p96 = scmp.le.s32.totalorder 1, %s15
      %p97 = scmp.lt.s32.totalorder %s15, 3
      %p98 = pnand %p96, %p97
      %p99 = pneg %p98
      // Predicated region
      $region9: #{tpu_custom_call.1} parent=5 // pred_check
        _
      $region10: #{tpu_custom_call.1} parent=5 // pred_check_branch
        %101 = sbr.rel (%p98) target = $region12
      $region11: #{tpu_custom_call.1} parent=5 // pred_region
        %s102 = ssub.s32 %s15, 1
        // Predicated region
        $region13: #{tpu_custom_call.1} parent=11 // pred_check
          %p103 = pneg %p36
        $region14: #{tpu_custom_call.1} parent=11 // pred_check_branch
          %105 = sbr.rel (%p103) target = $region16
        $region15: #{tpu_custom_call.1} parent=11 // pred_region
          %s107 = ssub.s32 16, 16
          %108 = vsyncadd [#allocation5], %s107
          %111 = dma.hbm_to_smem %s0, 16, [#allocation2], [#allocation5]
        $region16: #{tpu_custom_call.1} parent=11 // pred_fallthru
          _
      $region12: #{tpu_custom_call.1} parent=5 // pred_fallthru
        _
      %p112 = scmp.lt.s32.totalorder %s15, 2
      // Predicated region
      $region17: #{tpu_custom_call.1} parent=5 // pred_check
        %p113 = pneg %p112
      $region18: #{tpu_custom_call.1} parent=5 // pred_check_branch
        %115 = sbr.rel (%p113) target = $region20
      $region19: #{tpu_custom_call.1} parent=5 // pred_region
        // Predicated region
        $region21: #{tpu_custom_call.1} parent=19 // pred_check
          %p116 = pneg %p56
        $region22: #{tpu_custom_call.1} parent=19 // pred_check_branch
          %118 = sbr.rel (%p116) target = $region24
        $region23: #{tpu_custom_call.1} parent=19 // pred_region
          %s119 = sand.u32 %s46, 1
          %s120 = scalar_lea.sflag [#allocation3], %s119
          %s121 = sand.u32 %s46, 1
          %s122 = smul.addr %s121, 8
          %s123 = scalar_lea.vmem [#allocation6], %s122
          %s125 = ssub.s32 128, 128
          %126 = vsyncadd %s120, %s125
          %s127 = smul.addr %s15, 2
          %s128 = smul.addr %s127, 64
          %s129 = scalar_lea.hbm %s1, %s128
          %s131 = sshll.u32 %s123, 4
          %s132 = int_to_ptr.vmem [resolvable:$true] %s131
          %134 = dma.hbm_to_vmem [thread:$0]  %s129, 128, %s132, %s120
        $region24: #{tpu_custom_call.1} parent=19 // pred_fallthru
          _
      $region20: #{tpu_custom_call.1} parent=5 // pred_fallthru
        _
      %p135 = scmp.le.s32.totalorder 1, %s15
      %p136 = scmp.lt.s32.totalorder %s15, 3
      %p137 = pnand %p135, %p136
      %p138 = pneg %p137
      // Predicated region
      $region25: #{tpu_custom_call.1} parent=5 // pred_check
        _
      $region26: #{tpu_custom_call.1} parent=5 // pred_check_branch
        %140 = sbr.rel (%p137) target = $region28
      $region27: #{tpu_custom_call.1} parent=5 // pred_region
        %s141 = ssub.s32 %s15, 1
        // Predicated region
        $region29: #{tpu_custom_call.1} parent=27 // pred_check
          %p142 = pneg %p36
        $region30: #{tpu_custom_call.1} parent=27 // pred_check_branch
          %144 = sbr.rel (%p142) target = $region32
        $region31: #{tpu_custom_call.1} parent=27 // pred_region
          %145 = dma.done [#allocation5], 16
        $region32: #{tpu_custom_call.1} parent=27 // pred_fallthru
          _
        %s146 = sand.u32 %s49, 1
        %s147 = scalar_lea.sflag [#allocation3], %s146
        %s148 = sand.u32 %s49, 1
        %s149 = smul.addr %s148, 8
        %s150 = scalar_lea.vmem [#allocation6], %s149
        // Predicated region
        $region33: #{tpu_custom_call.1} parent=27 // pred_check
          %p151 = pneg %p62
        $region34: #{tpu_custom_call.1} parent=27 // pred_check_branch
          %153 = sbr.rel (%p151) target = $region36
        $region35: #{tpu_custom_call.1} parent=27 // pred_region
          %154 = dma.done %s147, 128
        $region36: #{tpu_custom_call.1} parent=27 // pred_fallthru
          _
        %155 = sfence
        %p156 = pneg %p36
        %p157 = pneg %p33
        %s158 = sand.u32 %s49, 1
        %s159 = scalar_lea.sflag [#allocation3], %s158
        %s160 = sand.u32 %s49, 1
        %s161 = smul.addr %s160, 8
        %s162 = scalar_lea.vmem [#allocation6], %s161
        %p163 = pneg %p62
        %p164 = pneg %p59
        %p165 = pneg %p88
        %p166 = pneg %p85
        %s167 = sand.u32 %s75, 1
        %s168 = scalar_lea.sflag [#allocation4], %s167
        %s169 = sand.u32 %s75, 1
        %s170 = smul.addr %s169, 8
        %s171 = scalar_lea.vmem [#allocation7], %s170
        %v172 = vld [vmem:[%s150] sm:$0xf]
        %v173 = vadd.f32 %v172, 0.0
        %s174 = scalar_lea.vmem %s150, 4 [#allocation6]
        %v175 = vld [vmem:[%s174] sm:$0xf]
        %v176 = vadd.f32 %v173, %v175
        %vm177 = vcmask 1043456
        %v178 = vsel %vm177, %v176, 0.0
        %179 = vadd.xlane.f32.xlu0 %v178
        %v180 = vpop.xlane.xlu0 %179
        %v181 = vmul.f32 %v180, 0.00390625
        %v182 = vlaneseq
        %v183 = vshrl.u32 %v182, 7
        %v184 = vlaneseq
        %v185 = vand.u32 %v184, 127
        %v186 = vsub.s32 %v183, 1
        %vm187 = vcmp.eq.s32.totalorder %v185, %v186
        %s188 = sld [smem:[#allocation2]]
        %v189 = vstv %s188
        %v190 = vsel %vm187, %v189, 0.0
        %vm191 = vcmp.eq.s32.totalorder %v185, %v183
        %s192 = sld [smem:[#allocation2 + $0x1]]
        %v193 = vstv %s192
        %v194 = vsel %vm191, %v193, 0.0
        %v195 = vadd.f32 %v190, %v194
        %v196 = vadd.s32 %v183, 1
        %vm197 = vcmp.eq.s32.totalorder %v185, %v196
        %s198 = sld [smem:[#allocation2 + $0x2]]
        %v199 = vstv %s198
        %v200 = vsel %vm197, %v199, 0.0
        %v201 = vadd.f32 %v195, %v200
        %vm202 = vcmask 31744
        %v204 = vsel %vm202, %v201, 0
        %v207 = vsel %vm177, %v181, 0
        %209 = vmatprep.subr.mxu0 0.0
        %210 = vmatpush1.msra.mxu0 %v207
        %211 = vmatprep.subr.mxu0 0.0
        %212 = vmatpush1.msra.mxu0 0.0
        %213 = vmatprep.subr.mxu0 0.0
        %214 = vmatpush1.msra.mxu0 0.0
        %215 = vmatprep.subr.mxu0 0.0
        %216 = vmatpush1.msra.mxu0 0.0
        %217 = vmatprep.subr.mxu0 0.0
        %218 = vmatpush1.msra.mxu0 0.0
        %219 = vmatprep.subr.mxu0 0.0
        %220 = vmatpush1.msra.mxu0 0.0
        %221 = vmatprep.subr.mxu0 0.0
        %222 = vmatpush1.msra.mxu0 0.0
        %223 = vmatprep.subr.mxu0 0.0
        %224 = vmatpush1.msra.mxu0 0.0
        %225 = vmatprep.subr.mxu0 0.0
        %226 = vmatpush1.msra.mxu0 0.0
        %227 = vmatprep.subr.mxu0 0.0
        %228 = vmatpush1.msra.mxu0 0.0
        %229 = vmatprep.subr.mxu0 0.0
        %230 = vmatpush1.msra.mxu0 0.0
        %231 = vmatprep.subr.mxu0 0.0
        %232 = vmatpush1.msra.mxu0 0.0
        %233 = vmatprep.subr.mxu0 0.0
        %234 = vmatpush1.msra.mxu0 0.0
        %235 = vmatprep.subr.mxu0 0.0
        %236 = vmatpush1.msra.mxu0 0.0
        %237 = vmatprep.subr.mxu0 0.0
        %238 = vmatpush1.msra.mxu0 0.0
        %239 = vmatprep.subr.mxu0 0.0
        %240 = vmatpush1.msra.mxu0 0.0
        %241 = vmatprep.subr.mxu0 0.0
        %242 = vmatpush1.msra.mxu0 0.0
        %243 = vmatprep.subr.mxu0 0.0
        %244 = vmatpush1.msra.mxu0 0.0
        %245 = vmatprep.subr.mxu0 0.0
        %246 = vmatpush1.msra.mxu0 0.0
        %247 = vmatprep.subr.mxu0 0.0
        %248 = vmatpush1.msra.mxu0 0.0
        %249 = vmatprep.subr.mxu0 0.0
        %250 = vmatpush1.msra.mxu0 0.0
        %251 = vmatprep.subr.mxu0 0.0
        %252 = vmatpush1.msra.mxu0 0.0
        %253 = vmatprep.subr.mxu0 0.0
        %254 = vmatpush1.msra.mxu0 0.0
        %255 = vmatprep.subr.mxu0 0.0
        %256 = vmatpush1.msra.mxu0 0.0
        %257 = vmatprep.subr.mxu0 0.0
        %258 = vmatpush1.msra.mxu0 0.0
        %259 = vmatprep.subr.mxu0 0.0
        %260 = vmatpush1.msra.mxu0 0.0
        %261 = vmatprep.subr.mxu0 0.0
        %262 = vmatpush1.msra.mxu0 0.0
        %263 = vmatprep.subr.mxu0 0.0
        %264 = vmatpush1.msra.mxu0 0.0
        %265 = vmatprep.subr.mxu0 0.0
        %266 = vmatpush1.msra.mxu0 0.0
        %267 = vmatprep.subr.mxu0 0.0
        %268 = vmatpush1.msra.mxu0 0.0
        %269 = vmatprep.subr.mxu0 0.0
        %270 = vmatpush1.msra.mxu0 0.0
        %271 = vmatprep.subr.mxu0 0.0
        %272 = vmatpush1.msra.mxu0 0.0
        %273 = vmatprep.mubr.f32.mxu0 0.0
        %274 = vmatmul.mubr.f32.gmra.mrb[0].mxu0 %v204
        %v275 = vpop.f32.mrb[0].mxu0
        %v276 = vadd.f32 0.0, %v275
        %v277 = vpop.f32.mrb[0].mxu0
        %278 = vdwg.mxu0
        %v279 = vxor.u32 %v276, 2147483648
        %v280 = vmul.f32 %v279, 1.442695
        %v281 = vpow.pop %v280
        %v282 = vadd.f32 %v281, 1.0
        %v283 = vrcp.pop %v282
        %v284 = vmul.f32 1.0, %v283
        %v285 = vadd.f32 %v284, 1.0
        %v286 = vld [vmem:[%s150] sm:$0xff]
        %288 = vset.pattern.permute.xlu0 0
        %289 = vperm.xlu0 %288, %v285
        %v290 = vpop.permute.xlu0 %289
        %v292 = vunpack.c.l.s4 839922192
        %v293 = vunpack.c.0.s8 %v292
        %v294 = vlaneseq
        %v295 = vshrl.u32 %v294, 7
        %v296 = vsub.s32 %v293, %v295
        %v297 = vrot.slane %v290, %v296
        %v299 = vmul.f32 %v286, %v297
        %300 = vst [vmem:[%s171] sm:$0xff] %v299
        %s301 = sand.u32 %s75, 1
        %s302 = scalar_lea.sflag [#allocation4], %s301
        %s303 = sand.u32 %s75, 1
        %s304 = smul.addr %s303, 8
        %s305 = scalar_lea.vmem [#allocation7], %s304
        // Predicated region
        $region37: #{tpu_custom_call.1} parent=27 // pred_check
          %p306 = pneg %p85
        $region38: #{tpu_custom_call.1} parent=27 // pred_check_branch
          %308 = sbr.rel (%p306) target = $region40
        $region39: #{tpu_custom_call.1} parent=27 // pred_region
          %s310 = ssub.s32 128, 128
          %311 = vsyncadd %s302, %s310
          %s312 = smul.addr %s20, 2
          %s313 = smul.addr %s312, 64
          %s314 = scalar_lea.hbm %s2, %s313
          %s316 = sshll.u32 %s305, 4
          %s317 = int_to_ptr.vmem [resolvable:$true] %s316
          %319 = dma.vmem_to_hbm [thread:$0]  %s317, 128, %s314, %s302
        $region40: #{tpu_custom_call.1} parent=27 // pred_fallthru
          _
      $region28: #{tpu_custom_call.1} parent=5 // pred_fallthru
        _
      %p320 = scmp.le.s32.totalorder 2, %s15
      // Predicated region
      $region41: #{tpu_custom_call.1} parent=5 // pred_check
        %p321 = pneg %p320
      $region42: #{tpu_custom_call.1} parent=5 // pred_check_branch
        %323 = sbr.rel (%p321) target = $region44
      $region43: #{tpu_custom_call.1} parent=5 // pred_region
        %s324 = ssub.s32 %s15, 2
        // Predicated region
        $region45: #{tpu_custom_call.1} parent=43 // pred_check
          %p325 = pneg %p91
        $region46: #{tpu_custom_call.1} parent=43 // pred_check_branch
          %327 = sbr.rel (%p325) target = $region48
        $region47: #{tpu_custom_call.1} parent=43 // pred_region
          %s328 = sand.u32 %s76, 1
          %s329 = scalar_lea.sflag [#allocation4], %s328
          %s330 = sand.u32 %s76, 1
          %s331 = smul.addr %s330, 8
          %s332 = scalar_lea.vmem [#allocation7], %s331
          %333 = dma.done %s329, 128
        $region48: #{tpu_custom_call.1} parent=43 // pred_fallthru
          _
      $region44: #{tpu_custom_call.1} parent=5 // pred_fallthru
        _
    $region6: #{tpu_custom_call.1} parent=1 // loop_footer
      %s19 = sadd.s32 1, %s15
    $region7: #{tpu_custom_call.1} parent=1 // loop_footer_branch
      %14 = sbr.rel target = $region3
    $region8: #{tpu_custom_call.1} parent=1 // loop_exit
      _
    %334 = vsyncpa [#allocation3], 1
    %s335 = scalar_lea.sflag [#allocation3], 1
    %336 = vsyncpa %s335, 1
    %337 = vsyncpa [#allocation4], 1
    %s338 = scalar_lea.sflag [#allocation4], 1
    %339 = vsyncpa %s338, 1
    %340 = vsyncpa [#allocation5], 1
    %s341 = scalar_lea.sflag [#allocation5], 1
    %342 = vsyncpa %s341, 1

</llo_original>
